<compile_context>
chip_gen: v6e
topology: v6e:2x2x1
jax: 0.10.0
libtpu: 0.0.40
codegen_flags: <defaults>
</compile_context>

<pallas_src>
import jax
import jax.numpy as jnp
from jax.experimental import pallas as pl
from jax.experimental.pallas import tpu as pltpu


def _round_up(n, m):
    return ((n + m - 1) // m) * m


# Single-buffer weight blocks once they exceed this (double-buffering constant
# blocks only wastes VMEM; relevant for hidden_dim >= ~2048 on v7x).
_SINGLE_BUFFER_BYTES = 2 * 1024 * 1024


def _const_spec(shape, nbytes):
    """BlockSpec for a fully-resident operand (same block every grid step)."""
    index_map = lambda i: (0,) * len(shape)
    if nbytes >= _SINGLE_BUFFER_BYTES:
        try:
            return pl.BlockSpec(shape, index_map,
                                pipeline_mode=pl.Buffered(buffer_count=1))
        except (TypeError, AttributeError):
            pass  # older jax: fall back to default (double-buffered) blocks
    return pl.BlockSpec(shape, index_map)


def bc_mlp_kernel(x_ref, w1_ref, b1_ref, w2_ref, b2_ref, w3_ref, b3_ref, o_ref):
    """Fused 3-layer MLP with ReLU activations.

    One batch tile of `x` is resident in VMEM per grid step; all weights
    (bf16) and biases (f32) stay resident for the whole call. All three
    matmuls use bf16 operands with f32 accumulation on the MXU.
    """
    x = x_ref[...].astype(jnp.bfloat16)

    # Layer 1: Linear(input_dim -> hidden) + ReLU
    h1 = jnp.dot(x, w1_ref[...], preferred_element_type=jnp.float32) + b1_ref[...]
    h1 = jnp.maximum(h1, 0.0).astype(jnp.bfloat16)

    # Layer 2: Linear(hidden -> hidden) + ReLU
    h2 = jnp.dot(h1, w2_ref[...], preferred_element_type=jnp.float32) + b2_ref[...]
    h2 = jnp.maximum(h2, 0.0).astype(jnp.bfloat16)

    # Layer 3: Linear(hidden -> output_dim), raw action logits (no activation)
    out = jnp.dot(h2, w3_ref[...], preferred_element_type=jnp.float32) + b3_ref[...]

    o_ref[...] = out.astype(o_ref.dtype)


def prepare_params(params):
    """One-time conversion of f32 params into kernel-ready operands.

    Weights -> bf16 (MXU operand dtype); biases stay f32 and are added to the
    f32 accumulator inside the kernel. Call once and reuse; doing the cast per
    forward call would add wrapper-side HBM passes on every inference.
    """
    bf16, f32 = jnp.bfloat16, jnp.float32
    return {
        "w1": params["w1"].astype(bf16),
        "b1": params["b1"].astype(f32).reshape(1, -1),
        "w2": params["w2"].astype(bf16),
        "b2": params["b2"].astype(f32).reshape(1, -1),
        "w3": params["w3"].astype(bf16),
        "b3": params["b3"].astype(f32).reshape(1, -1),
    }


def behavioral_cloning_forward(x, prepared, *, batch_tile=1024):
    """Run the fused MLP kernel.

    Args:
      x: [B, input_dim] float32 state vectors (passed unpadded).
      prepared: output of prepare_params() — bf16 weights [in, out], f32
        biases [1, out].
      batch_tile: max rows of x per grid step (rounded to a multiple of 16).
    Returns:
      [B, output_dim] float32 action logits.
    """
    B, input_dim = x.shape
    hidden_dim = prepared["w1"].shape[1]
    output_dim = prepared["w3"].shape[1]
    assert prepared["w1"].shape[0] == input_dim
    assert hidden_dim % 128 == 0, "hidden_dim should be a multiple of 128"

    # Batch tile: multiple of 16, capped at the (rounded-up) batch. When the
    # batch is big enough, also cap so the grid has >= 2 steps for v7x
    # megacore sharding of the "parallel" axis.
    tb = max(16, min(_round_up(batch_tile, 16), _round_up(B, 16)))
    if B >= 512:
        tb = min(tb, max(256, _round_up(pl.cdiv(B, 2), 256)))
    grid = (pl.cdiv(B, tb),)  # ragged tail handled by Pallas partial blocks

    w1, b1 = prepared["w1"], prepared["b1"]
    w2, b2 = prepared["w2"], prepared["b2"]
    w3, b3 = prepared["w3"], prepared["b3"]

    flops = 2 * B * (input_dim * hidden_dim
                     + hidden_dim * hidden_dim
                     + hidden_dim * output_dim)
    bytes_accessed = (
        x.size * x.dtype.itemsize
        + (w1.size + w2.size + w3.size) * 2
        + (b1.size + b2.size + b3.size) * 4
        + B * output_dim * 4
    )

    # Explicit VMEM budget (v7x has only 64 MiB physical / 32 MiB scoped
    # default): x/out double buffers + resident weights/biases + f32/bf16
    # activation temporaries, with 2x headroom.
    weight_bytes = (w1.size + w2.size + w3.size) * 2
    bias_bytes = (b1.size + b2.size + b3.size) * 4
    vmem_need = (
        2 * tb * input_dim * x.dtype.itemsize   # x double buffer
        + 2 * tb * output_dim * 4               # out double buffer (f32)
        + weight_bytes + bias_bytes             # resident operands
        + 2 * tb * hidden_dim * (4 + 2)         # h1/h2 f32 + bf16 temporaries
    )
    vmem_limit = int(min(48 * 2 ** 20, max(2 * vmem_need, 8 * 2 ** 20)))

    out = pl.pallas_call(
        bc_mlp_kernel,
        out_shape=jax.ShapeDtypeStruct((B, output_dim), jnp.float32),
        grid_spec=pltpu.PrefetchScalarGridSpec(
            num_scalar_prefetch=0,
            grid=grid,
            in_specs=[
                pl.BlockSpec((tb, input_dim), lambda i: (i, 0)),        # x tile
                _const_spec((input_dim, hidden_dim), w1.size * 2),      # w1
                _const_spec((1, hidden_dim), b1.size * 4),              # b1
                _const_spec((hidden_dim, hidden_dim), w2.size * 2),     # w2
                _const_spec((1, hidden_dim), b2.size * 4),              # b2
                _const_spec((hidden_dim, output_dim), w3.size * 2),     # w3
                _const_spec((1, output_dim), b3.size * 4),              # b3
            ],
            out_specs=pl.BlockSpec((tb, output_dim), lambda i: (i, 0)),
        ),
        compiler_params=pltpu.CompilerParams(
            dimension_semantics=("parallel",),
            vmem_limit_bytes=vmem_limit,
        ),
        cost_estimate=pl.CostEstimate(
            flops=flops, transcendentals=0, bytes_accessed=bytes_accessed
        ),
    )(x, w1, b1, w2, b2, w3, b3)

    return out


def behavioral_cloning_apply(x, params, prepared, *, min_pallas_rows=64,
                             batch_tile=1024):
    """Dispatch helper: a single-step Pallas launch is pure overhead for tiny
    batches, so fall back to the plain XLA path there (numerics: full f32)."""
    if x.shape[0] < min_pallas_rows:
        return reference_forward_f32(x, params)
    return behavioral_cloning_forward(x, prepared, batch_tile=batch_tile)


def init_params(key, input_dim, output_dim, hidden_dim):
    """Deterministic init mimicking nn.Linear's Kaiming-uniform-ish scale."""
    k1, k2, k3, k4, k5, k6 = jax.random.split(key, 6)

    def lin(kw, kb, fan_in, fan_out):
        bound = 1.0 / jnp.sqrt(jnp.float32(fan_in))
        w = jax.random.uniform(kw, (fan_in, fan_out), jnp.float32, -bound, bound)
        b = jax.random.uniform(kb, (1, fan_out), jnp.float32, -bound, bound)
        return w, b

    w1, b1 = lin(k1, k2, input_dim, hidden_dim)
    w2, b2 = lin(k3, k4, hidden_dim, hidden_dim)
    w3, b3 = lin(k5, k6, hidden_dim, output_dim)
    return {"w1": w1, "b1": b1, "w2": w2, "b2": b2, "w3": w3, "b3": b3}


def reference_forward_bf16(x, p):
    """Pure-jnp reference with the same bf16-operand / f32-accum dtype chain."""
    bf16, f32 = jnp.bfloat16, jnp.float32
    h1 = jnp.dot(x.astype(bf16), p["w1"].astype(bf16),
                 preferred_element_type=f32) + p["b1"]
    h1 = jnp.maximum(h1, 0.0).astype(bf16)
    h2 = jnp.dot(h1, p["w2"].astype(bf16),
                 preferred_element_type=f32) + p["b2"]
    h2 = jnp.maximum(h2, 0.0).astype(bf16)
    return jnp.dot(h2, p["w3"].astype(bf16), preferred_element_type=f32) + p["b3"]


def reference_forward_f32(x, p):
    h1 = jnp.maximum(x @ p["w1"] + p["b1"], 0.0)
    h2 = jnp.maximum(h1 @ p["w2"] + p["b2"], 0.0)
    return h2 @ p["w3"] + p["b3"]


if __name__ == "__main__":
    # Small shapes consistent with the module: state vector -> action logits.
    input_dim = 32
    output_dim = 16
    hidden_dim = 256  # module default

    key = jax.random.PRNGKey(0)
    kx1, kx2, kp = jax.random.split(key, 3)
    params = init_params(kp, input_dim, output_dim, hidden_dim)
    prepared = prepare_params(params)  # one-time bf16 cast, reused below

    # Case 1: multi-step grid with a ragged batch tail (50 = 3*16 + 2),
    # exercising the cdiv grid + partial-block writeback.
    x1 = jax.random.normal(kx1, (50, input_dim), jnp.float32)
    out1 = jax.block_until_ready(
        behavioral_cloning_forward(x1, prepared, batch_tile=16))
    assert out1.shape == (50, output_dim)

    # Case 2: default tile, single-step grid (tiny batch).
    x2 = jax.random.normal(kx2, (8, input_dim), jnp.float32)
    out2 = jax.block_until_ready(behavioral_cloning_forward(x2, prepared))
    assert out2.shape == (8, output_dim)

    for x, out in ((x1, out1), (x2, out2)):
        # Tight check vs. a reference using the identical bf16-operand chain.
        ref_bf16 = reference_forward_bf16(x, params)
        assert jnp.allclose(out, ref_bf16, atol=1e-2, rtol=1e-2), \
            "mismatch vs bf16 reference"
        # Loose sanity check vs. the full-f32 PyTorch-equivalent forward.
        ref_f32 = reference_forward_f32(x, params)
        assert jnp.allclose(out, ref_f32, atol=1e-1, rtol=1e-1), \
            "mismatch vs f32 reference"

    print("KERNEL_OK")
</pallas_src>

<mosaic_0001>
module attributes {stable_mosaic.version = 11 : i64} {
  func.func @bc_mlp_kernel(%arg0: i32, %arg1: memref<16x32xf32, #tpu.memory_space<vmem>>, %arg2: memref<32x256xbf16, #tpu.memory_space<vmem>>, %arg3: memref<1x256xf32, #tpu.memory_space<vmem>>, %arg4: memref<256x256xbf16, #tpu.memory_space<vmem>>, %arg5: memref<1x256xf32, #tpu.memory_space<vmem>>, %arg6: memref<256x16xbf16, #tpu.memory_space<vmem>>, %arg7: memref<1x16xf32, #tpu.memory_space<vmem>>, %arg8: memref<16x16xf32, #tpu.memory_space<vmem>>) attributes {dimension_semantics = [#tpu.dimension_semantics<parallel>], iteration_bounds = array<i64: 4>, scalar_prefetch = 0 : i64, scratch_operands = 0 : i64, tpu.core_type = #tpu.core_type<tc>, window_params = [{transform_indices = @transform_0, window_bounds = array<i64: 16, 32>}, {pipeline_mode = #tpu.pipeline_mode<synchronous>, transform_indices = @transform_1, window_bounds = array<i64: 32, 256>}, {pipeline_mode = #tpu.pipeline_mode<synchronous>, transform_indices = @transform_2, window_bounds = array<i64: 1, 256>}, {pipeline_mode = #tpu.pipeline_mode<synchronous>, transform_indices = @transform_3, window_bounds = array<i64: 256, 256>}, {pipeline_mode = #tpu.pipeline_mode<synchronous>, transform_indices = @transform_4, window_bounds = array<i64: 1, 256>}, {pipeline_mode = #tpu.pipeline_mode<synchronous>, transform_indices = @transform_5, window_bounds = array<i64: 256, 16>}, {pipeline_mode = #tpu.pipeline_mode<synchronous>, transform_indices = @transform_6, window_bounds = array<i64: 1, 16>}, {transform_indices = @transform_7, window_bounds = array<i64: 16, 16>}]} {
    %c0 = arith.constant 0 : index
    %c0_0 = arith.constant 0 : index
    %0 = vector.load %arg1[%c0, %c0_0] : memref<16x32xf32, #tpu.memory_space<vmem>>, vector<16x32xf32>
    %1 = arith.truncf %0 : vector<16x32xf32> to vector<16x32xbf16>
    %c0_1 = arith.constant 0 : index
    %c0_2 = arith.constant 0 : index
    %2 = vector.load %arg2[%c0_1, %c0_2] : memref<32x256xbf16, #tpu.memory_space<vmem>>, vector<32x256xbf16>
    %cst = arith.constant dense<0.000000e+00> : vector<16x256xf32>
    %3 = tpu.matmul %1, %2, %cst {dimension_numbers = #tpu.dot_dimension_numbers<[1], [0], [0], [1], [0, 0, 1, 1], [], []>} : vector<16x32xbf16>, vector<32x256xbf16>, vector<16x256xf32> -> vector<16x256xf32>
    %c0_3 = arith.constant 0 : index
    %c0_4 = arith.constant 0 : index
    %4 = vector.load %arg3[%c0_3, %c0_4] : memref<1x256xf32, #tpu.memory_space<vmem>>, vector<1x256xf32>
    %5 = vector.broadcast %4 : vector<1x256xf32> to vector<16x256xf32>
    %6 = arith.addf %3, %5 : vector<16x256xf32>
    %cst_5 = arith.constant 0.000000e+00 : f32
    %7 = vector.broadcast %cst_5 : f32 to vector<16x256xf32>
    %8 = arith.maximumf %6, %7 : vector<16x256xf32>
    %9 = arith.truncf %8 : vector<16x256xf32> to vector<16x256xbf16>
    %c0_6 = arith.constant 0 : index
    %c0_7 = arith.constant 0 : index
    %10 = vector.load %arg4[%c0_6, %c0_7] : memref<256x256xbf16, #tpu.memory_space<vmem>>, vector<256x256xbf16>
    %cst_8 = arith.constant dense<0.000000e+00> : vector<16x256xf32>
    %11 = tpu.matmul %9, %10, %cst_8 {dimension_numbers = #tpu.dot_dimension_numbers<[1], [0], [0], [1], [0, 0, 1, 1], [], []>} : vector<16x256xbf16>, vector<256x256xbf16>, vector<16x256xf32> -> vector<16x256xf32>
    %c0_9 = arith.constant 0 : index
    %c0_10 = arith.constant 0 : index
    %12 = vector.load %arg5[%c0_9, %c0_10] : memref<1x256xf32, #tpu.memory_space<vmem>>, vector<1x256xf32>
    %13 = vector.broadcast %12 : vector<1x256xf32> to vector<16x256xf32>
    %14 = arith.addf %11, %13 : vector<16x256xf32>
    %cst_11 = arith.constant 0.000000e+00 : f32
    %15 = vector.broadcast %cst_11 : f32 to vector<16x256xf32>
    %16 = arith.maximumf %14, %15 : vector<16x256xf32>
    %17 = arith.truncf %16 : vector<16x256xf32> to vector<16x256xbf16>
    %c0_12 = arith.constant 0 : index
    %c0_13 = arith.constant 0 : index
    %18 = vector.load %arg6[%c0_12, %c0_13] : memref<256x16xbf16, #tpu.memory_space<vmem>>, vector<256x16xbf16>
    %cst_14 = arith.constant dense<0.000000e+00> : vector<16x16xf32>
    %19 = tpu.matmul %17, %18, %cst_14 {dimension_numbers = #tpu.dot_dimension_numbers<[1], [0], [0], [1], [0, 0, 1, 1], [], []>} : vector<16x256xbf16>, vector<256x16xbf16>, vector<16x16xf32> -> vector<16x16xf32>
    %c0_15 = arith.constant 0 : index
    %c0_16 = arith.constant 0 : index
    %20 = vector.load %arg7[%c0_15, %c0_16] : memref<1x16xf32, #tpu.memory_space<vmem>>, vector<1x16xf32>
    %21 = vector.broadcast %20 : vector<1x16xf32> to vector<16x16xf32>
    %22 = arith.addf %19, %21 : vector<16x16xf32>
    %c0_17 = arith.constant 0 : index
    %c0_18 = arith.constant 0 : index
    %23 = vector.load %arg8[%c0_17, %c0_18] : memref<16x16xf32, #tpu.memory_space<vmem>>, vector<16x16xf32>
    tpu.vector_store %arg8[%c0_17, %c0_18], %22 {strides = array<i32>} : memref<16x16xf32, #tpu.memory_space<vmem>>, vector<16x16xf32>,
    return
  }
  func.func @transform_0(%arg0: i32) -> (i32, i32) {
    %c0_i32 = arith.constant 0 : i32
    %c0_i32_0 = arith.constant 0 : i32
    return %arg0, %c0_i32 : i32, i32
  }
  func.func @transform_1(%arg0: i32) -> (i32, i32) {
    %c0_i32 = arith.constant 0 : i32
    %c0_i32_0 = arith.constant 0 : i32
    %c0_i32_1 = arith.constant 0 : i32
    return %c0_i32, %c0_i32_0 : i32, i32
  }
  func.func @transform_2(%arg0: i32) -> (i32, i32) {
    %c0_i32 = arith.constant 0 : i32
    %c0_i32_0 = arith.constant 0 : i32
    %c0_i32_1 = arith.constant 0 : i32
    return %c0_i32, %c0_i32_0 : i32, i32
  }
  func.func @transform_3(%arg0: i32) -> (i32, i32) {
    %c0_i32 = arith.constant 0 : i32
    %c0_i32_0 = arith.constant 0 : i32
    %c0_i32_1 = arith.constant 0 : i32
    return %c0_i32, %c0_i32_0 : i32, i32
  }
  func.func @transform_4(%arg0: i32) -> (i32, i32) {
    %c0_i32 = arith.constant 0 : i32
    %c0_i32_0 = arith.constant 0 : i32
    %c0_i32_1 = arith.constant 0 : i32
    return %c0_i32, %c0_i32_0 : i32, i32
  }
  func.func @transform_5(%arg0: i32) -> (i32, i32) {
    %c0_i32 = arith.constant 0 : i32
    %c0_i32_0 = arith.constant 0 : i32
    %c0_i32_1 = arith.constant 0 : i32
    return %c0_i32, %c0_i32_0 : i32, i32
  }
  func.func @transform_6(%arg0: i32) -> (i32, i32) {
    %c0_i32 = arith.constant 0 : i32
    %c0_i32_0 = arith.constant 0 : i32
    %c0_i32_1 = arith.constant 0 : i32
    return %c0_i32, %c0_i32_0 : i32, i32
  }
  func.func @transform_7(%arg0: i32) -> (i32, i32) {
    %c0_i32 = arith.constant 0 : i32
    %c0_i32_0 = arith.constant 0 : i32
    return %arg0, %c0_i32 : i32, i32
  }
}

</mosaic_0001>

<llo_original>
// kernel: tpu_custom_call.1
$region0: #{tpu_custom_call.1}
  #allocation0 [shape = 'u32[]', space=smem, size = 0x4, offset = 0x4, fixed_abs, tag = 'smem constant byte address 0x4 - core index']
  #allocation1 [shape = 'u32[144,128]{1,0:T(1,128)}', space=vmem, size = 0x12000, scoped, tag = 'internal scratch']
  %s0 = inlined_call_operand.vmem [shape: f32[50,32], index: 0, kind: input, shape index: {}]
  %s1 = inlined_call_operand.vmem [shape: bf16[32,256], index: 1, kind: input, shape index: {}]
  %s2 = inlined_call_operand.vmem [shape: f32[1,256], index: 2, kind: input, shape index: {}]
  %s3 = inlined_call_operand.hbm [shape: bf16[256,256], index: 3, kind: input, shape index: {}]
  %s4 = inlined_call_operand.vmem [shape: f32[1,256], index: 4, kind: input, shape index: {}]
  %s5 = inlined_call_operand.vmem [shape: bf16[256,16], index: 5, kind: input, shape index: {}]
  %s6 = inlined_call_operand.vmem [shape: f32[1,16], index: 6, kind: input, shape index: {}]
  %s7 = inlined_call_operand.vmem [shape: f32[50,16], index: 7, kind: output, shape index: {}]
  %s8 = sld [smem:[#allocation0]]
  $region113: #{tpu_custom_call.1} parent=0
    _
  %s10 = ssub.s32 1, %s8
  %s11 = scalar_select 0, %s10, %s8
  $region1: #{tpu_custom_call.1} parent=0
    #allocation2 [shape = 'u8[131072]{0}', space=vmem, size = 0x20000, scoped, tag = 'input window, operand 3, single buffered']
    #allocation3 [shape = 's32[2]{0}', space=sflag, size = 0x8, scoped, tag = 'scoped memory for tpu_custom_call.1']
    #allocation4 [shape = 'u8[16384]{0}', space=vmem, size = 0x4000, scoped, tag = 'output window, operand 0']
    %12 = vsyncpa [#allocation3], 0
    loop: start=0, step=1, limit=6
    $region2: #{tpu_custom_call.1} parent=1 // loop_pre_header
      _
    $region3: #{tpu_custom_call.1} parent=1 // loop_header
      %s14 = sphi 0, %s18
      %p15 = scmp.ge.s32.totalorder %s14, 6
      %s24 = sphi 0, %s26
      %s27 = sphi 0, %s24
      %s28 = sphi 0, %s27
      %s44 = sphi 0, %s28
      %s48 = sphi 0, %s48
      %s50 = sphi 0, %s48
      %s51 = sphi 0, %s50
      %s65 = sphi 0, %s51
      %s69 = sphi 0, %s69
      %s71 = sphi 0, %s69
      %s72 = sphi 0, %s71
      %s86 = sphi 0, %s72
      %s90 = sphi 0, %s90
      %s92 = sphi 0, %s90
      %s93 = sphi 0, %s92
      %s107 = sphi 0, %s93
      %s111 = sphi 0, %s111
      %s113 = sphi 0, %s111
      %s114 = sphi 0, %s113
      %s128 = sphi 0, %s114
      %s132 = sphi 0, %s132
      %s134 = sphi 0, %s132
      %s135 = sphi 0, %s134
      %s149 = sphi 0, %s135
      %s153 = sphi 0, %s153
      %s155 = sphi 0, %s153
      %s156 = sphi 0, %s155
      %s170 = sphi 0, %s156
      %s176 = sphi 0, %s178
      %s179 = sphi 0, %s176
      %s180 = sphi 0, %s179
      %s196 = sphi 0, %s180
    $region4: #{tpu_custom_call.1} parent=1 // loop_header_branch
      %17 = sbr.rel (%p15) target = $region8
    $region5: #{tpu_custom_call.1} parent=1 // loop_body
      %s19 = ssub.s32 %s14, 1
      %s20 = ssub.s32 %s14, 2
      %s21 = sadd.s32 %s14, 1
      %s22 = ssub.s32 %s14, %s21
      %p23 = scmp.eq.s32.totalorder %s22, 0
      %s25 = sadd.s32 %s24, 1
      %s26 = scalar_select %p23, %s24, %s25
      %p29 = pneg %p23
      %p30 = scmp.eq.s32.totalorder %s14, 3
      %p31 = por %p29, %p30
      %p32 = scmp.ne.s32.totalorder %s24, %s27
      %p33 = scmp.eq.s32.totalorder %s14, 0
      %p34 = por %p32, %p33
      %p35 = scmp.ne.s32.totalorder %s24, %s27
      %p36 = scmp.eq.s32.totalorder %s19, 3
      %p37 = por %p35, %p36
      %p38 = scmp.ne.s32.totalorder %s27, %s28
      %p39 = scmp.eq.s32.totalorder %s19, 0
      %p40 = por %p38, %p39
      %p41 = scmp.ne.s32.totalorder %s27, %s28
      %p42 = scmp.eq.s32.totalorder %s20, 3
      %p43 = por %p41, %p42
      %p45 = scmp.ne.s32.totalorder %s28, %s44
      %p46 = scmp.eq.s32.totalorder %s20, 0
      %p47 = por %p45, %p46
      %s49 = sadd.s32 %s48, 1
      %p52 = scmp.eq.s32.totalorder %s14, 3
      %p53 = scmp.ne.s32.totalorder %s48, %s50
      %p54 = scmp.eq.s32.totalorder %s14, 0
      %p55 = por %p53, %p54
      %p56 = scmp.ne.s32.totalorder %s48, %s50
      %p57 = scmp.eq.s32.totalorder %s19, 3
      %p58 = por %p56, %p57
      %p59 = scmp.ne.s32.totalorder %s50, %s51
      %p60 = scmp.eq.s32.totalorder %s19, 0
      %p61 = por %p59, %p60
      %p62 = scmp.ne.s32.totalorder %s50, %s51
      %p63 = scmp.eq.s32.totalorder %s20, 3
      %p64 = por %p62, %p63
      %p66 = scmp.ne.s32.totalorder %s51, %s65
      %p67 = scmp.eq.s32.totalorder %s20, 0
      %p68 = por %p66, %p67
      %s70 = sadd.s32 %s69, 1
      %p73 = scmp.eq.s32.totalorder %s14, 3
      %p74 = scmp.ne.s32.totalorder %s69, %s71
      %p75 = scmp.eq.s32.totalorder %s14, 0
      %p76 = por %p74, %p75
      %p77 = scmp.ne.s32.totalorder %s69, %s71
      %p78 = scmp.eq.s32.totalorder %s19, 3
      %p79 = por %p77, %p78
      %p80 = scmp.ne.s32.totalorder %s71, %s72
      %p81 = scmp.eq.s32.totalorder %s19, 0
      %p82 = por %p80, %p81
      %p83 = scmp.ne.s32.totalorder %s71, %s72
      %p84 = scmp.eq.s32.totalorder %s20, 3
      %p85 = por %p83, %p84
      %p87 = scmp.ne.s32.totalorder %s72, %s86
      %p88 = scmp.eq.s32.totalorder %s20, 0
      %p89 = por %p87, %p88
      %s91 = sadd.s32 %s90, 1
      %p94 = scmp.eq.s32.totalorder %s14, 3
      %p95 = scmp.ne.s32.totalorder %s90, %s92
      %p96 = scmp.eq.s32.totalorder %s14, 0
      %p97 = por %p95, %p96
      %p98 = scmp.ne.s32.totalorder %s90, %s92
      %p99 = scmp.eq.s32.totalorder %s19, 3
      %p100 = por %p98, %p99
      %p101 = scmp.ne.s32.totalorder %s92, %s93
      %p102 = scmp.eq.s32.totalorder %s19, 0
      %p103 = por %p101, %p102
      %p104 = scmp.ne.s32.totalorder %s92, %s93
      %p105 = scmp.eq.s32.totalorder %s20, 3
      %p106 = por %p104, %p105
      %p108 = scmp.ne.s32.totalorder %s93, %s107
      %p109 = scmp.eq.s32.totalorder %s20, 0
      %p110 = por %p108, %p109
      %s112 = sadd.s32 %s111, 1
      %p115 = scmp.eq.s32.totalorder %s14, 3
      %p116 = scmp.ne.s32.totalorder %s111, %s113
      %p117 = scmp.eq.s32.totalorder %s14, 0
      %p118 = por %p116, %p117
      %p119 = scmp.ne.s32.totalorder %s111, %s113
      %p120 = scmp.eq.s32.totalorder %s19, 3
      %p121 = por %p119, %p120
      %p122 = scmp.ne.s32.totalorder %s113, %s114
      %p123 = scmp.eq.s32.totalorder %s19, 0
      %p124 = por %p122, %p123
      %p125 = scmp.ne.s32.totalorder %s113, %s114
      %p126 = scmp.eq.s32.totalorder %s20, 3
      %p127 = por %p125, %p126
      %p129 = scmp.ne.s32.totalorder %s114, %s128
      %p130 = scmp.eq.s32.totalorder %s20, 0
      %p131 = por %p129, %p130
      %s133 = sadd.s32 %s132, 1
      %p136 = scmp.eq.s32.totalorder %s14, 3
      %p137 = scmp.ne.s32.totalorder %s132, %s134
      %p138 = scmp.eq.s32.totalorder %s14, 0
      %p139 = por %p137, %p138
      %p140 = scmp.ne.s32.totalorder %s132, %s134
      %p141 = scmp.eq.s32.totalorder %s19, 3
      %p142 = por %p140, %p141
      %p143 = scmp.ne.s32.totalorder %s134, %s135
      %p144 = scmp.eq.s32.totalorder %s19, 0
      %p145 = por %p143, %p144
      %p146 = scmp.ne.s32.totalorder %s134, %s135
      %p147 = scmp.eq.s32.totalorder %s20, 3
      %p148 = por %p146, %p147
      %p150 = scmp.ne.s32.totalorder %s135, %s149
      %p151 = scmp.eq.s32.totalorder %s20, 0
      %p152 = por %p150, %p151
      %s154 = sadd.s32 %s153, 1
      %p157 = scmp.eq.s32.totalorder %s14, 3
      %p158 = scmp.ne.s32.totalorder %s153, %s155
      %p159 = scmp.eq.s32.totalorder %s14, 0
      %p160 = por %p158, %p159
      %p161 = scmp.ne.s32.totalorder %s153, %s155
      %p162 = scmp.eq.s32.totalorder %s19, 3
      %p163 = por %p161, %p162
      %p164 = scmp.ne.s32.totalorder %s155, %s156
      %p165 = scmp.eq.s32.totalorder %s19, 0
      %p166 = por %p164, %p165
      %p167 = scmp.ne.s32.totalorder %s155, %s156
      %p168 = scmp.eq.s32.totalorder %s20, 3
      %p169 = por %p167, %p168
      %p171 = scmp.ne.s32.totalorder %s156, %s170
      %p172 = scmp.eq.s32.totalorder %s20, 0
      %p173 = por %p171, %p172
      %s174 = ssub.s32 %s14, %s21
      %p175 = scmp.eq.s32.totalorder %s174, 0
      %s177 = sadd.s32 %s176, 1
      %s178 = scalar_select %p175, %s176, %s177
      %p181 = pneg %p175
      %p182 = scmp.eq.s32.totalorder %s14, 3
      %p183 = por %p181, %p182
      %p184 = scmp.ne.s32.totalorder %s176, %s179
      %p185 = scmp.eq.s32.totalorder %s14, 0
      %p186 = por %p184, %p185
      %p187 = scmp.ne.s32.totalorder %s176, %s179
      %p188 = scmp.eq.s32.totalorder %s19, 3
      %p189 = por %p187, %p188
      %p190 = scmp.ne.s32.totalorder %s179, %s180
      %p191 = scmp.eq.s32.totalorder %s19, 0
      %p192 = por %p190, %p191
      %p193 = scmp.ne.s32.totalorder %s179, %s180
      %p194 = scmp.eq.s32.totalorder %s20, 3
      %p195 = por %p193, %p194
      %p197 = scmp.ne.s32.totalorder %s180, %s196
      %p198 = scmp.eq.s32.totalorder %s20, 0
      %p199 = por %p197, %p198
      %p200 = scmp.le.s32.totalorder 1, %s14
      %p201 = scmp.lt.s32.totalorder %s14, 5
      %p202 = pnand %p200, %p201
      %p203 = pneg %p202
      // Predicated region
      $region9: #{tpu_custom_call.1} parent=5 // pred_check
        _
      $region10: #{tpu_custom_call.1} parent=5 // pred_check_branch
        %205 = sbr.rel (%p202) target = $region12
      $region11: #{tpu_custom_call.1} parent=5 // pred_region
        %s206 = ssub.s32 %s14, 1
        // Predicated region
        $region13: #{tpu_custom_call.1} parent=11 // pred_check
          %p207 = pneg %p61
        $region14: #{tpu_custom_call.1} parent=11 // pred_check_branch
          %209 = sbr.rel (%p207) target = $region16
        $region15: #{tpu_custom_call.1} parent=11 // pred_region
          _
        $region16: #{tpu_custom_call.1} parent=11 // pred_fallthru
          _
        // Predicated region
        $region17: #{tpu_custom_call.1} parent=11 // pred_check
          %p210 = pneg %p82
        $region18: #{tpu_custom_call.1} parent=11 // pred_check_branch
          %212 = sbr.rel (%p210) target = $region20
        $region19: #{tpu_custom_call.1} parent=11 // pred_region
          _
        $region20: #{tpu_custom_call.1} parent=11 // pred_fallthru
          _
        // Predicated region
        $region21: #{tpu_custom_call.1} parent=11 // pred_check
          %p213 = pneg %p103
        $region22: #{tpu_custom_call.1} parent=11 // pred_check_branch
          %215 = sbr.rel (%p213) target = $region24
        $region23: #{tpu_custom_call.1} parent=11 // pred_region
          %s217 = ssub.s32 4096, 4096
          %218 = vsyncadd [#allocation3], %s217
          %s219 = sshll.u32 [#allocation2], 4
          %s220 = int_to_ptr.vmem [resolvable:$true] %s219
          %225 = dma.hbm_to_vmem [thread:$0]  %s3, 4096, %s220, [#allocation3], 128, 128, 8
        $region24: #{tpu_custom_call.1} parent=11 // pred_fallthru
          _
        // Predicated region
        $region25: #{tpu_custom_call.1} parent=11 // pred_check
          %p226 = pneg %p124
        $region26: #{tpu_custom_call.1} parent=11 // pred_check_branch
          %228 = sbr.rel (%p226) target = $region28
        $region27: #{tpu_custom_call.1} parent=11 // pred_region
          _
        $region28: #{tpu_custom_call.1} parent=11 // pred_fallthru
          _
        // Predicated region
        $region29: #{tpu_custom_call.1} parent=11 // pred_check
          %p229 = pneg %p145
        $region30: #{tpu_custom_call.1} parent=11 // pred_check_branch
          %231 = sbr.rel (%p229) target = $region32
        $region31: #{tpu_custom_call.1} parent=11 // pred_region
          _
        $region32: #{tpu_custom_call.1} parent=11 // pred_fallthru
          _
        // Predicated region
        $region33: #{tpu_custom_call.1} parent=11 // pred_check
          %p232 = pneg %p166
        $region34: #{tpu_custom_call.1} parent=11 // pred_check_branch
          %234 = sbr.rel (%p232) target = $region36
        $region35: #{tpu_custom_call.1} parent=11 // pred_region
          _
        $region36: #{tpu_custom_call.1} parent=11 // pred_fallthru
          _
      $region12: #{tpu_custom_call.1} parent=5 // pred_fallthru
        _
      %p235 = scmp.lt.s32.totalorder %s14, 4
      // Predicated region
      $region37: #{tpu_custom_call.1} parent=5 // pred_check
        %p236 = pneg %p235
      $region38: #{tpu_custom_call.1} parent=5 // pred_check_branch
        %238 = sbr.rel (%p236) target = $region40
      $region39: #{tpu_custom_call.1} parent=5 // pred_region
        // Predicated region
        $region41: #{tpu_custom_call.1} parent=39 // pred_check
          %p239 = pneg %p34
        $region42: #{tpu_custom_call.1} parent=39 // pred_check_branch
          %241 = sbr.rel (%p239) target = $region44
        $region43: #{tpu_custom_call.1} parent=39 // pred_region
          %s242 = smul.u32 2, %s14
          %s243 = ssub.s32 7, %s242
          %p244 = scmp.lt.s32.totalorder %s243, 2
          %s245 = scalar_select %p244, %s243, 2
          %s246 = smul.u32 128, %s245
          %p247 = scmp.lt.s32.totalorder %s242, 6
          %s248 = scalar_select %p247, %s242, 6
          %s249 = smul.addr %s248, 8
          %s250 = scalar_lea.vmem %s0, %s249
          %s251 = smul.u32 2, %s14
          %s252 = ssub.s32 7, %s251
          %p253 = scmp.lt.s32.totalorder %s252, 2
          %s254 = scalar_select %p253, %s252, 2
          %s255 = smul.u32 128, %s254
        $region44: #{tpu_custom_call.1} parent=39 // pred_fallthru
          _
      $region40: #{tpu_custom_call.1} parent=5 // pred_fallthru
        _
      %p256 = scmp.le.s32.totalorder 1, %s14
      %p257 = scmp.lt.s32.totalorder %s14, 5
      %p258 = pnand %p256, %p257
      %p259 = pneg %p258
      // Predicated region
      $region45: #{tpu_custom_call.1} parent=5 // pred_check
        _
      $region46: #{tpu_custom_call.1} parent=5 // pred_check_branch
        %261 = sbr.rel (%p258) target = $region48
      $region47: #{tpu_custom_call.1} parent=5 // pred_region
        %s262 = ssub.s32 %s14, 1
        // Predicated region
        $region49: #{tpu_custom_call.1} parent=47 // pred_check
          %p263 = pneg %p103
        $region50: #{tpu_custom_call.1} parent=47 // pred_check_branch
          %265 = sbr.rel (%p263) target = $region52
        $region51: #{tpu_custom_call.1} parent=47 // pred_region
          %266 = dma.done [#allocation3], 4096
        $region52: #{tpu_custom_call.1} parent=47 // pred_fallthru
          _
        %s267 = smul.u32 2, %s19
        %s268 = ssub.s32 7, %s267
        %p269 = scmp.lt.s32.totalorder %s268, 2
        %s270 = scalar_select %p269, %s268, 2
        %s271 = smul.u32 128, %s270
        %p272 = scmp.lt.s32.totalorder %s267, 6
        %s273 = scalar_select %p272, %s267, 6
        %s274 = smul.addr %s273, 8
        %s275 = scalar_lea.vmem %s0, %s274
        %p276 = pneg %p40
        %p277 = pneg %p37
        %p278 = pneg %p61
        %p279 = pneg %p58
        %p280 = pneg %p82
        %p281 = pneg %p79
        %p282 = pneg %p103
        %p283 = pneg %p100
        %p284 = pneg %p124
        %p285 = pneg %p121
        %p286 = pneg %p145
        %p287 = pneg %p142
        %p288 = pneg %p166
        %p289 = pneg %p163
        %p290 = pneg %p192
        %p291 = pneg %p189
        %s292 = sand.u32 %s179, 1
        %s293 = sand.u32 %s179, 1
        %s294 = smul.addr %s293, 16
        %s295 = scalar_lea.vmem [#allocation4], %s294
        %s296 = smul.u32 2, %s19
        %s297 = ssub.s32 7, %s296
        %p298 = scmp.lt.s32.totalorder %s297, 2
        %s299 = scalar_select %p298, %s297, 2
        %s300 = smul.u32 128, %s299
        %p301 = scmp.lt.s32.totalorder %s296, 6
        %s302 = scalar_select %p301, %s296, 6
        %s303 = smul.addr %s302, 8
        %s304 = scalar_lea.vmem %s0, %s303
        %s305 = smul.u32 2, %s19
        %s306 = ssub.s32 7, %s305
        %p307 = scmp.lt.s32.totalorder %s306, 2
        %s308 = scalar_select %p307, %s306, 2
        %s309 = smul.u32 128, %s308
        %s310 = smul.u32 2, %s19
        %s311 = ssub.s32 7, %s310
        %p312 = scmp.lt.s32.totalorder %s311, 2
        %s313 = scalar_select %p312, %s311, 2
        %s314 = smul.u32 128, %s313
        %v316 = vld [vmem:[%s304] sm:$0xff]
        %v317 = vld [vmem:[%s304 + $0x8] sm:$0xff]
        %v318 = vpack.c.bf16 %v317, %v316
        %v319 = vld [vmem:[%s1] sm:$0xff]
        %v320 = vld [vmem:[%s1 + $0x8] sm:$0xff]
        %v321 = vld [vmem:[%s1 + $0x10] sm:$0xff]
        %v322 = vld [vmem:[%s1 + $0x18] sm:$0xff]
        %v323 = vld [vmem:[%s2] sm:$0x3]
        %v325 = vlaneseq
        %v326 = vshrl.u32 %v325, 7
        %v327 = vsub.s32 0, %v326
        %v328 = vrot.slane %v323, %v327
        %v329 = vlaneseq
        %v330 = vshrl.u32 %v329, 7
        %v331 = vsub.s32 1, %v330
        %v332 = vrot.slane %v323, %v331
        %v339 = vunpack.c.l.b16 %v319
        %v340 = vunpack.c.h.b16 %v319
        %v341 = vunpack.c.l.b16 %v320
        %v342 = vunpack.c.h.b16 %v320
        %v343 = vunpack.c.l.b16 %v321
        %v344 = vunpack.c.h.b16 %v321
        %v345 = vunpack.c.l.b16 %v322
        %v346 = vunpack.c.h.b16 %v322
        %v347 = vpack.c.b16 %v341, %v339
        %v348 = vpack.c.b16 %v342, %v340
        %v349 = vpack.c.b16 %v345, %v343
        %v350 = vpack.c.b16 %v346, %v344
        %vm355 = vcmask 261120
        %v357 = vsel %vm355, %v318, 0
        %359 = vmatprep.subr.bf16.mxu0 0
        %360 = vmatpush1.bf16.msra.mxu0 0
        %361 = vmatprep.subr.bf16.mxu0 0
        %362 = vmatpush1.bf16.msra.mxu0 0
        %363 = vmatprep.subr.bf16.mxu0 0
        %364 = vmatpush1.bf16.msra.mxu0 0
        %365 = vmatprep.subr.bf16.mxu0 0
        %366 = vmatpush1.bf16.msra.mxu0 0
        %367 = vmatprep.subr.bf16.mxu0 0
        %368 = vmatpush1.bf16.msra.mxu0 0
        %369 = vmatprep.subr.bf16.mxu0 0
        %370 = vmatpush1.bf16.msra.mxu0 0
        %371 = vmatprep.subr.bf16.mxu0 %v350
        %372 = vmatpush1.bf16.msra.mxu0 %v349
        %373 = vmatprep.subr.bf16.mxu0 %v348
        %374 = vmatpush1.bf16.msra.mxu0 %v347
        %375 = vmatprep.subr.bf16.mxu0 0
        %376 = vmatpush2.bf16.msra.mxu0 0
        %377 = vmatprep.subr.bf16.mxu0 0
        %378 = vmatpush2.bf16.msra.mxu0 0
        %379 = vmatprep.subr.bf16.mxu0 0
        %380 = vmatpush2.bf16.msra.mxu0 0
        %381 = vmatprep.subr.bf16.mxu0 0
        %382 = vmatpush2.bf16.msra.mxu0 0
        %383 = vmatprep.subr.bf16.mxu0 0
        %384 = vmatpush2.bf16.msra.mxu0 0
        %385 = vmatprep.subr.bf16.mxu0 0
        %386 = vmatpush2.bf16.msra.mxu0 0
        %387 = vmatprep.subr.bf16.mxu0 0
        %388 = vmatpush2.bf16.msra.mxu0 0
        %389 = vmatprep.subr.bf16.mxu0 0
        %390 = vmatpush2.bf16.msra.mxu0 0
        %391 = vmatprep.mubr.bf16.mxu0 0
        %392 = vmatmul.mubr.bf16.gmra.mxu0 %v357
        %v393 = vpop.f32.mrf.mxu0
        %v394 = vadd.f32 %v328, %v393
        %v395 = vpop.f32.mrf.mxu0
        %v396 = vadd.f32 %v332, %v395
        %v397 = vpop.f32.mrf.mxu0
        %v398 = vadd.f32 %v328, %v397
        %v399 = vpop.f32.mrf.mxu0
        %v400 = vadd.f32 %v332, %v399
        %401 = vdwg.mxu0
        %v402 = vmax.f32 %v394, 0.0
        %v403 = vmax.f32 %v396, 0.0
        %v404 = vmax.f32 %v398, 0.0
        %v405 = vmax.f32 %v400, 0.0
        %v406 = vpack.c.bf16 %v404, %v402
        %v407 = vpack.c.bf16 %v405, %v403
        %v408 = vld [vmem:[#allocation2] sm:$0xff]
        %v409 = vld [vmem:[#allocation2 + $0x8] sm:$0xff]
        %v410 = vld [vmem:[#allocation2 + $0x10] sm:$0xff]
        %v411 = vld [vmem:[#allocation2 + $0x18] sm:$0xff]
        %v412 = vld [vmem:[#allocation2 + $0x20] sm:$0xff]
        %v413 = vld [vmem:[#allocation2 + $0x28] sm:$0xff]
        %v414 = vld [vmem:[#allocation2 + $0x30] sm:$0xff]
        %v415 = vld [vmem:[#allocation2 + $0x38] sm:$0xff]
        %v416 = vld [vmem:[#allocation2 + $0x40] sm:$0xff]
        %v417 = vld [vmem:[#allocation2 + $0x48] sm:$0xff]
        %v418 = vld [vmem:[#allocation2 + $0x50] sm:$0xff]
        %v419 = vld [vmem:[#allocation2 + $0x58] sm:$0xff]
        %v420 = vld [vmem:[#allocation2 + $0x60] sm:$0xff]
        %v421 = vld [vmem:[#allocation2 + $0x68] sm:$0xff]
        %v422 = vld [vmem:[#allocation2 + $0x70] sm:$0xff]
        %v423 = vld [vmem:[#allocation2 + $0x78] sm:$0xff]
        %v424 = vld [vmem:[#allocation2 + $0x80] sm:$0xff]
        %v425 = vld [vmem:[#allocation2 + $0x88] sm:$0xff]
        %v426 = vld [vmem:[#allocation2 + $0x90] sm:$0xff]
        %v427 = vld [vmem:[#allocation2 + $0x98] sm:$0xff]
        %v428 = vld [vmem:[#allocation2 + $0xa0] sm:$0xff]
        %v429 = vld [vmem:[#allocation2 + $0xa8] sm:$0xff]
        %v430 = vld [vmem:[#allocation2 + $0xb0] sm:$0xff]
        %v431 = vld [vmem:[#allocation2 + $0xb8] sm:$0xff]
        %v432 = vld [vmem:[#allocation2 + $0xc0] sm:$0xff]
        %v433 = vld [vmem:[#allocation2 + $0xc8] sm:$0xff]
        %v434 = vld [vmem:[#allocation2 + $0xd0] sm:$0xff]
        %v435 = vld [vmem:[#allocation2 + $0xd8] sm:$0xff]
        %v436 = vld [vmem:[#allocation2 + $0xe0] sm:$0xff]
        %v437 = vld [vmem:[#allocation2 + $0xe8] sm:$0xff]
        %v438 = vld [vmem:[#allocation2 + $0xf0] sm:$0xff]
        %v439 = vld [vmem:[#allocation2 + $0xf8] sm:$0xff]
        %v440 = vld [vmem:[%s4] sm:$0x3]
        %v442 = vlaneseq
        %v443 = vshrl.u32 %v442, 7
        %v444 = vsub.s32 0, %v443
        %v445 = vrot.slane %v440, %v444
        %v446 = vlaneseq
        %v447 = vshrl.u32 %v446, 7
        %v448 = vsub.s32 1, %v447
        %v449 = vrot.slane %v440, %v448
        %v484 = vunpack.c.l.b16 %v408
        %v485 = vunpack.c.h.b16 %v408
        %v486 = vunpack.c.l.b16 %v409
        %v487 = vunpack.c.h.b16 %v409
        %v488 = vunpack.c.l.b16 %v410
        %v489 = vunpack.c.h.b16 %v410
        %v490 = vunpack.c.l.b16 %v411
        %v491 = vunpack.c.h.b16 %v411
        %v492 = vunpack.c.l.b16 %v412
        %v493 = vunpack.c.h.b16 %v412
        %v494 = vunpack.c.l.b16 %v413
        %v495 = vunpack.c.h.b16 %v413
        %v496 = vunpack.c.l.b16 %v414
        %v497 = vunpack.c.h.b16 %v414
        %v498 = vunpack.c.l.b16 %v415
        %v499 = vunpack.c.h.b16 %v415
        %v500 = vunpack.c.l.b16 %v416
        %v501 = vunpack.c.h.b16 %v416
        %v502 = vunpack.c.l.b16 %v417
        %v503 = vunpack.c.h.b16 %v417
        %v504 = vunpack.c.l.b16 %v418
        %v505 = vunpack.c.h.b16 %v418
        %v506 = vunpack.c.l.b16 %v419
        %v507 = vunpack.c.h.b16 %v419
        %v508 = vunpack.c.l.b16 %v420
        %v509 = vunpack.c.h.b16 %v420
        %v510 = vunpack.c.l.b16 %v421
        %v511 = vunpack.c.h.b16 %v421
        %v512 = vunpack.c.l.b16 %v422
        %v513 = vunpack.c.h.b16 %v422
        %v514 = vunpack.c.l.b16 %v423
        %v515 = vunpack.c.h.b16 %v423
        %v516 = vunpack.c.l.b16 %v424
        %v517 = vunpack.c.h.b16 %v424
        %v518 = vunpack.c.l.b16 %v425
        %v519 = vunpack.c.h.b16 %v425
        %v520 = vunpack.c.l.b16 %v426
        %v521 = vunpack.c.h.b16 %v426
        %v522 = vunpack.c.l.b16 %v427
        %v523 = vunpack.c.h.b16 %v427
        %v524 = vunpack.c.l.b16 %v428
        %v525 = vunpack.c.h.b16 %v428
        %v526 = vunpack.c.l.b16 %v429
        %v527 = vunpack.c.h.b16 %v429
        %v528 = vunpack.c.l.b16 %v430
        %v529 = vunpack.c.h.b16 %v430
        %v530 = vunpack.c.l.b16 %v431
        %v531 = vunpack.c.h.b16 %v431
        %v532 = vunpack.c.l.b16 %v432
        %v533 = vunpack.c.h.b16 %v432
        %v534 = vunpack.c.l.b16 %v433
        %v535 = vunpack.c.h.b16 %v433
        %v536 = vunpack.c.l.b16 %v434
        %v537 = vunpack.c.h.b16 %v434
        %v538 = vunpack.c.l.b16 %v435
        %v539 = vunpack.c.h.b16 %v435
        %v540 = vunpack.c.l.b16 %v436
        %v541 = vunpack.c.h.b16 %v436
        %v542 = vunpack.c.l.b16 %v437
        %v543 = vunpack.c.h.b16 %v437
        %v544 = vunpack.c.l.b16 %v438
        %v545 = vunpack.c.h.b16 %v438
        %v546 = vunpack.c.l.b16 %v439
        %v547 = vunpack.c.h.b16 %v439
        %v548 = vpack.c.b16 %v486, %v484
        %v549 = vpack.c.b16 %v487, %v485
        %v550 = vpack.c.b16 %v490, %v488
        %v551 = vpack.c.b16 %v491, %v489
        %v552 = vpack.c.b16 %v494, %v492
        %v553 = vpack.c.b16 %v495, %v493
        %v554 = vpack.c.b16 %v498, %v496
        %v555 = vpack.c.b16 %v499, %v497
        %v556 = vpack.c.b16 %v502, %v500
        %v557 = vpack.c.b16 %v503, %v501
        %v558 = vpack.c.b16 %v506, %v504
        %v559 = vpack.c.b16 %v507, %v505
        %v560 = vpack.c.b16 %v510, %v508
        %v561 = vpack.c.b16 %v511, %v509
        %v562 = vpack.c.b16 %v514, %v512
        %v563 = vpack.c.b16 %v515, %v513
        %v564 = vpack.c.b16 %v518, %v516
        %v565 = vpack.c.b16 %v519, %v517
        %v566 = vpack.c.b16 %v522, %v520
        %v567 = vpack.c.b16 %v523, %v521
        %v568 = vpack.c.b16 %v526, %v524
        %v569 = vpack.c.b16 %v527, %v525
        %v570 = vpack.c.b16 %v530, %v528
        %v571 = vpack.c.b16 %v531, %v529
        %v572 = vpack.c.b16 %v534, %v532
        %v573 = vpack.c.b16 %v535, %v533
        %v574 = vpack.c.b16 %v538, %v536
        %v575 = vpack.c.b16 %v539, %v537
        %v576 = vpack.c.b16 %v542, %v540
        %v577 = vpack.c.b16 %v543, %v541
        %v578 = vpack.c.b16 %v546, %v544
        %v579 = vpack.c.b16 %v547, %v545
        %612 = vmatprep.subr.bf16.mxu0 %v563
        %613 = vmatpush1.bf16.msra.mxu0 %v562
        %614 = vmatprep.subr.bf16.mxu0 %v561
        %615 = vmatpush1.bf16.msra.mxu0 %v560
        %616 = vmatprep.subr.bf16.mxu0 %v559
        %617 = vmatpush1.bf16.msra.mxu0 %v558
        %618 = vmatprep.subr.bf16.mxu0 %v557
        %619 = vmatpush1.bf16.msra.mxu0 %v556
        %620 = vmatprep.subr.bf16.mxu0 %v555
        %621 = vmatpush1.bf16.msra.mxu0 %v554
        %622 = vmatprep.subr.bf16.mxu0 %v553
        %623 = vmatpush1.bf16.msra.mxu0 %v552
        %624 = vmatprep.subr.bf16.mxu0 %v551
        %625 = vmatpush1.bf16.msra.mxu0 %v550
        %626 = vmatprep.subr.bf16.mxu0 %v549
        %627 = vmatpush1.bf16.msra.mxu0 %v548
        %628 = vmatprep.subr.bf16.mxu0 %v579
        %629 = vmatpush2.bf16.msra.mxu0 %v578
        %630 = vmatprep.subr.bf16.mxu0 %v577
        %631 = vmatpush2.bf16.msra.mxu0 %v576
        %632 = vmatprep.subr.bf16.mxu0 %v575
        %633 = vmatpush2.bf16.msra.mxu0 %v574
        %634 = vmatprep.subr.bf16.mxu0 %v573
        %635 = vmatpush2.bf16.msra.mxu0 %v572
        %636 = vmatprep.subr.bf16.mxu0 %v571
        %637 = vmatpush2.bf16.msra.mxu0 %v570
        %638 = vmatprep.subr.bf16.mxu0 %v569
        %639 = vmatpush2.bf16.msra.mxu0 %v568
        %640 = vmatprep.subr.bf16.mxu0 %v567
        %641 = vmatpush2.bf16.msra.mxu0 %v566
        %642 = vmatprep.subr.bf16.mxu0 %v565
        %643 = vmatpush2.bf16.msra.mxu0 %v564
        %644 = vmatprep.mubr.bf16.mxu0 %v407
        %645 = vmatmul.mubr.bf16.gmra.mxu0 %v406
        %v646 = vpop.f32.mrf.mxu0
        %v647 = vadd.f32 %v445, %v646
        %v648 = vpop.f32.mrf.mxu0
        %v649 = vadd.f32 %v449, %v648
        %v650 = vpop.f32.mrf.mxu0
        %v651 = vadd.f32 %v445, %v650
        %v652 = vpop.f32.mrf.mxu0
        %v653 = vadd.f32 %v449, %v652
        %654 = vdwg.mxu0
        %v655 = vmax.f32 %v647, 0.0
        %v656 = vmax.f32 %v649, 0.0
        %v657 = vmax.f32 %v651, 0.0
        %v658 = vmax.f32 %v653, 0.0
        %v659 = vpack.c.bf16 %v657, %v655
        %v660 = vpack.c.bf16 %v658, %v656
        %v661 = vld [vmem:[%s5] sm:$0xf]
        %v662 = vld [vmem:[%s5 + $0x4] sm:$0xf]
        %v663 = vld [vmem:[%s5 + $0x8] sm:$0xf]
        %v664 = vld [vmem:[%s5 + $0xc] sm:$0xf]
        %v665 = vld [vmem:[%s5 + $0x10] sm:$0xf]
        %v666 = vld [vmem:[%s5 + $0x14] sm:$0xf]
        %v667 = vld [vmem:[%s5 + $0x18] sm:$0xf]
        %v668 = vld [vmem:[%s5 + $0x1c] sm:$0xf]
        %v669 = vld [vmem:[%s5 + $0x20] sm:$0xf]
        %v670 = vld [vmem:[%s5 + $0x24] sm:$0xf]
        %v671 = vld [vmem:[%s5 + $0x28] sm:$0xf]
        %v672 = vld [vmem:[%s5 + $0x2c] sm:$0xf]
        %v673 = vld [vmem:[%s5 + $0x30] sm:$0xf]
        %v674 = vld [vmem:[%s5 + $0x34] sm:$0xf]
        %v675 = vld [vmem:[%s5 + $0x38] sm:$0xf]
        %v676 = vld [vmem:[%s5 + $0x3c] sm:$0xf]
        %v677 = vld [vmem:[%s5 + $0x40] sm:$0xf]
        %v678 = vld [vmem:[%s5 + $0x44] sm:$0xf]
        %v679 = vld [vmem:[%s5 + $0x48] sm:$0xf]
        %v680 = vld [vmem:[%s5 + $0x4c] sm:$0xf]
        %v681 = vld [vmem:[%s5 + $0x50] sm:$0xf]
        %v682 = vld [vmem:[%s5 + $0x54] sm:$0xf]
        %v683 = vld [vmem:[%s5 + $0x58] sm:$0xf]
        %v684 = vld [vmem:[%s5 + $0x5c] sm:$0xf]
        %v685 = vld [vmem:[%s5 + $0x60] sm:$0xf]
        %v686 = vld [vmem:[%s5 + $0x64] sm:$0xf]
        %v687 = vld [vmem:[%s5 + $0x68] sm:$0xf]
        %v688 = vld [vmem:[%s5 + $0x6c] sm:$0xf]
        %v689 = vld [vmem:[%s5 + $0x70] sm:$0xf]
        %v690 = vld [vmem:[%s5 + $0x74] sm:$0xf]
        %v691 = vld [vmem:[%s5 + $0x78] sm:$0xf]
        %v692 = vld [vmem:[%s5 + $0x7c] sm:$0xf]
        %v693 = vld [vmem:[%s6] sm:$0x1]
        %v695 = vlaneseq
        %v696 = vshrl.u32 %v695, 7
        %v697 = vsub.s32 0, %v696
        %v698 = vrot.slane %v693, %v697
        %v732 = vunpack.c.l.b16 %v661
        %v733 = vunpack.c.l.b16 %v662
        %v734 = vunpack.c.l.b16 %v663
        %v735 = vunpack.c.l.b16 %v664
        %v736 = vunpack.c.l.b16 %v665
        %v737 = vunpack.c.l.b16 %v666
        %v738 = vunpack.c.l.b16 %v667
        %v739 = vunpack.c.l.b16 %v668
        %v740 = vunpack.c.l.b16 %v669
        %v741 = vunpack.c.l.b16 %v670
        %v742 = vunpack.c.l.b16 %v671
        %v743 = vunpack.c.l.b16 %v672
        %v744 = vunpack.c.l.b16 %v673
        %v745 = vunpack.c.l.b16 %v674
        %v746 = vunpack.c.l.b16 %v675
        %v747 = vunpack.c.l.b16 %v676
        %v748 = vunpack.c.l.b16 %v677
        %v749 = vunpack.c.l.b16 %v678
        %v750 = vunpack.c.l.b16 %v679
        %v751 = vunpack.c.l.b16 %v680
        %v752 = vunpack.c.l.b16 %v681
        %v753 = vunpack.c.l.b16 %v682
        %v754 = vunpack.c.l.b16 %v683
        %v755 = vunpack.c.l.b16 %v684
        %v756 = vunpack.c.l.b16 %v685
        %v757 = vunpack.c.l.b16 %v686
        %v758 = vunpack.c.l.b16 %v687
        %v759 = vunpack.c.l.b16 %v688
        %v760 = vunpack.c.l.b16 %v689
        %v761 = vunpack.c.l.b16 %v690
        %v762 = vunpack.c.l.b16 %v691
        %v763 = vunpack.c.l.b16 %v692
        %v764 = vpack.c.b16 %v733, %v732
        %v765 = vpack.c.b16 %v735, %v734
        %v766 = vpack.c.b16 %v737, %v736
        %v767 = vpack.c.b16 %v739, %v738
        %v768 = vpack.c.b16 %v741, %v740
        %v769 = vpack.c.b16 %v743, %v742
        %v770 = vpack.c.b16 %v745, %v744
        %v771 = vpack.c.b16 %v747, %v746
        %v772 = vpack.c.b16 %v749, %v748
        %v773 = vpack.c.b16 %v751, %v750
        %v774 = vpack.c.b16 %v753, %v752
        %v775 = vpack.c.b16 %v755, %v754
        %v776 = vpack.c.b16 %v757, %v756
        %v777 = vpack.c.b16 %v759, %v758
        %v778 = vpack.c.b16 %v761, %v760
        %v779 = vpack.c.b16 %v763, %v762
        %796 = vmatprep.subr.bf16.mxu0 0
        %797 = vmatpush1.bf16.msra.mxu0 %v771
        %798 = vmatprep.subr.bf16.mxu0 0
        %799 = vmatpush1.bf16.msra.mxu0 %v770
        %800 = vmatprep.subr.bf16.mxu0 0
        %801 = vmatpush1.bf16.msra.mxu0 %v769
        %802 = vmatprep.subr.bf16.mxu0 0
        %803 = vmatpush1.bf16.msra.mxu0 %v768
        %804 = vmatprep.subr.bf16.mxu0 0
        %805 = vmatpush1.bf16.msra.mxu0 %v767
        %806 = vmatprep.subr.bf16.mxu0 0
        %807 = vmatpush1.bf16.msra.mxu0 %v766
        %808 = vmatprep.subr.bf16.mxu0 0
        %809 = vmatpush1.bf16.msra.mxu0 %v765
        %810 = vmatprep.subr.bf16.mxu0 0
        %811 = vmatpush1.bf16.msra.mxu0 %v764
        %812 = vmatprep.subr.bf16.mxu0 0
        %813 = vmatpush2.bf16.msra.mxu0 %v779
        %814 = vmatprep.subr.bf16.mxu0 0
        %815 = vmatpush2.bf16.msra.mxu0 %v778
        %816 = vmatprep.subr.bf16.mxu0 0
        %817 = vmatpush2.bf16.msra.mxu0 %v777
        %818 = vmatprep.subr.bf16.mxu0 0
        %819 = vmatpush2.bf16.msra.mxu0 %v776
        %820 = vmatprep.subr.bf16.mxu0 0
        %821 = vmatpush2.bf16.msra.mxu0 %v775
        %822 = vmatprep.subr.bf16.mxu0 0
        %823 = vmatpush2.bf16.msra.mxu0 %v774
        %824 = vmatprep.subr.bf16.mxu0 0
        %825 = vmatpush2.bf16.msra.mxu0 %v773
        %826 = vmatprep.subr.bf16.mxu0 0
        %827 = vmatpush2.bf16.msra.mxu0 %v772
        %828 = vmatprep.mubr.bf16.mxu0 %v660
        %829 = vmatmul.mubr.bf16.gmra.mxu0 %v659
        %v830 = vpop.f32.mrf.mxu0
        %v831 = vadd.f32 %v698, %v830
        %v832 = vpop.f32.mrf.mxu0
        %v833 = vpop.f32.mrf.mxu0
        %v834 = vadd.f32 %v698, %v833
        %v835 = vpop.f32.mrf.mxu0
        %836 = vdwg.mxu0
        %vm837 = vcmask 130048
        %838 = vst.msk [vmem:[%s295] sm:$0xff] %vm837, %v831
        %839 = vst.msk [vmem:[%s295 + $0x8] sm:$0xff] %vm837, %v834
        %s840 = sand.u32 %s179, 1
        %s841 = sand.u32 %s179, 1
        %s842 = smul.addr %s841, 16
        %s843 = scalar_lea.vmem [#allocation4], %s842
        // Predicated region
        $region53: #{tpu_custom_call.1} parent=47 // pred_check
          %p844 = pneg %p189
        $region54: #{tpu_custom_call.1} parent=47 // pred_check_branch
          %846 = sbr.rel (%p844) target = $region56
        $region55: #{tpu_custom_call.1} parent=47 // pred_region
          %s847 = smul.u32 2, %s19
          %s848 = ssub.s32 7, %s847
          %p849 = scmp.lt.s32.totalorder %s848, 2
          %s850 = scalar_select %p849, %s848, 2
          %s851 = smul.u32 128, %s850
          %p852 = scmp.ne.s32.totalorder 0, %s851
          %s853 = smul.addr %s847, 8
          %s854 = scalar_lea.vmem %s7, %s853
          // Predicated region
          $region57: #{tpu_custom_call.1} parent=55 // pred_check
            %p855 = pneg %p852
          $region58: #{tpu_custom_call.1} parent=55 // pred_check_branch
            %857 = sbr.rel (%p855) target = $region60
          $region59: #{tpu_custom_call.1} parent=55 // pred_region
            // Predicated region
            $region61: #{tpu_custom_call.1} parent=59 // pred_check
              _
            $region62: #{tpu_custom_call.1} parent=59 // pred_check_branch
              %859 = sbr.rel (0) target = $region64
            $region63: #{tpu_custom_call.1} parent=59 // pred_region
              // Predicated region
              $region83: #{tpu_custom_call.1} parent=63 // pred_check
                _
              $region84: #{tpu_custom_call.1} parent=63 // pred_check_branch
                %911 = sbr.rel (0) target = $region86
              $region85: #{tpu_custom_call.1} parent=63 // pred_region
                %s912 = sshrl.u32 %s850, 1
                // While loop
                $region87: #{tpu_custom_call.1} parent=85 // loop_pre_header
                  _
                $region88: #{tpu_custom_call.1} parent=85 // loop_header
                  %s914 = sphi 0, %s916
                  %p915 = scmp.ge.s32.totalorder %s914, %s912
                  %s919 = sphi 0, %s928
                  %s920 = sphi %s843, %s931
                  %s921 = sphi %s854, %s932
                $region89: #{tpu_custom_call.1} parent=85 // loop_header_branch
                  %918 = sbr.rel (%p915) target = $region93
                $region90: #{tpu_custom_call.1} parent=85 // loop_body
                  %v922 = vld [vmem:[%s920] sm:$0xff]
                  %923 = vst [vmem:[%s921] sm:$0xff] %v922
                  %v924 = vld [vmem:[%s920 + $0x8] sm:$0xff]
                  %925 = vst [vmem:[%s921 + $0x8] sm:$0xff] %v924
                  %s926 = sadd.s32 1, %s919
                  %p927 = scmp.ge.s32.totalorder %s926, %s912
                  %s928 = scalar_select %p927, 0, %s926
                  %s929 = smul.u32 %s928, 16
                  %s930 = smul.u32 %s928, 16
                  %s931 = scalar_lea.vmem %s843, %s929 [#allocation4]
                  %s932 = scalar_lea.vmem %s854, %s930
                $region91: #{tpu_custom_call.1} parent=85 // loop_footer
                  %s916 = sadd.s32 %s914, 1
                $region92: #{tpu_custom_call.1} parent=85 // loop_footer_branch
                  %913 = sbr.rel target = $region88
                $region93: #{tpu_custom_call.1} parent=85 // loop_exit
                  _
                %s933 = sshrl.u32 %s850, 1
                %s934 = sand.u32 %s850, 1
                %s935 = smul.u32 %s933, 2
                %s936 = smul.u32 8, %s935
                %s937 = scalar_lea.vmem %s843, %s936 [#allocation4]
                %s938 = smul.u32 8, %s935
                %s939 = scalar_lea.vmem %s854, %s938
                // While loop
                $region94: #{tpu_custom_call.1} parent=85 // loop_pre_header
                  _
                $region95: #{tpu_custom_call.1} parent=85 // loop_header
                  %s941 = sphi 0, %s943
                  %p942 = scmp.ge.s32.totalorder %s941, %s934
                  %s946 = sphi 0, %s953
                  %s947 = sphi %s937, %s956
                  %s948 = sphi %s939, %s957
                $region96: #{tpu_custom_call.1} parent=85 // loop_header_branch
                  %945 = sbr.rel (%p942) target = $region100
                $region97: #{tpu_custom_call.1} parent=85 // loop_body
                  %v949 = vld [vmem:[%s947] sm:$0xff]
                  %950 = vst [vmem:[%s948] sm:$0xff] %v949
                  %s951 = sadd.s32 1, %s946
                  %p952 = scmp.ge.s32.totalorder %s951, %s934
                  %s953 = scalar_select %p952, 0, %s951
                  %s954 = smul.u32 %s953, 8
                  %s955 = smul.u32 %s953, 8
                  %s956 = scalar_lea.vmem %s937, %s954 [#allocation4]
                  %s957 = scalar_lea.vmem %s939, %s955
                $region98: #{tpu_custom_call.1} parent=85 // loop_footer
                  %s943 = sadd.s32 %s941, 1
                $region99: #{tpu_custom_call.1} parent=85 // loop_footer_branch
                  %940 = sbr.rel target = $region95
                $region100: #{tpu_custom_call.1} parent=85 // loop_exit
                  _
              $region86: #{tpu_custom_call.1} parent=63 // pred_fallthru
                _
              // Predicated region
              $region101: #{tpu_custom_call.1} parent=63 // pred_check
                _
              $region102: #{tpu_custom_call.1} parent=63 // pred_check_branch
                %959 = sbr.rel target = $region104
              $region103: #{tpu_custom_call.1} parent=63 // pred_region
                _
              $region104: #{tpu_custom_call.1} parent=63 // pred_fallthru
                _
            $region64: #{tpu_custom_call.1} parent=59 // pred_fallthru
              _
            // Predicated region
            $region65: #{tpu_custom_call.1} parent=59 // pred_check
              _
            $region66: #{tpu_custom_call.1} parent=59 // pred_check_branch
              %861 = sbr.rel target = $region68
            $region67: #{tpu_custom_call.1} parent=59 // pred_region
              %s863 = ssub.s32 256, 1
              %s864 = sshrl.u32 %s850, 1
              // While loop
              $region69: #{tpu_custom_call.1} parent=67 // loop_pre_header
                _
              $region70: #{tpu_custom_call.1} parent=67 // loop_header
                %s866 = sphi 0, %s868
                %p867 = scmp.ge.s32.totalorder %s866, %s864
                %s871 = sphi 0, %s880
                %s872 = sphi %s843, %s883
                %s873 = sphi %s854, %s884
              $region71: #{tpu_custom_call.1} parent=67 // loop_header_branch
                %870 = sbr.rel (%p867) target = $region75
              $region72: #{tpu_custom_call.1} parent=67 // loop_body
                %v874 = vld [vmem:[%s872] sm:%s863]
                %875 = vst [vmem:[%s873] sm:%s863] %v874
                %v876 = vld [vmem:[%s872 + $0x8] sm:%s863]
                %877 = vst [vmem:[%s873 + $0x8] sm:%s863] %v876
                %s878 = sadd.s32 1, %s871
                %p879 = scmp.ge.s32.totalorder %s878, %s864
                %s880 = scalar_select %p879, 0, %s878
                %s881 = smul.u32 %s880, 16
                %s882 = smul.u32 %s880, 16
                %s883 = scalar_lea.vmem %s843, %s881 [#allocation4]
                %s884 = scalar_lea.vmem %s854, %s882
              $region73: #{tpu_custom_call.1} parent=67 // loop_footer
                %s868 = sadd.s32 %s866, 1
              $region74: #{tpu_custom_call.1} parent=67 // loop_footer_branch
                %865 = sbr.rel target = $region70
              $region75: #{tpu_custom_call.1} parent=67 // loop_exit
                _
              %s885 = sshrl.u32 %s850, 1
              %s886 = sand.u32 %s850, 1
              %s887 = smul.u32 %s885, 2
              %s888 = smul.u32 8, %s887
              %s889 = scalar_lea.vmem %s843, %s888 [#allocation4]
              %s890 = smul.u32 8, %s887
              %s891 = scalar_lea.vmem %s854, %s890
              // While loop
              $region76: #{tpu_custom_call.1} parent=67 // loop_pre_header
                _
              $region77: #{tpu_custom_call.1} parent=67 // loop_header
                %s893 = sphi 0, %s895
                %p894 = scmp.ge.s32.totalorder %s893, %s886
                %s898 = sphi 0, %s905
                %s899 = sphi %s889, %s908
                %s900 = sphi %s891, %s909
              $region78: #{tpu_custom_call.1} parent=67 // loop_header_branch
                %897 = sbr.rel (%p894) target = $region82
              $region79: #{tpu_custom_call.1} parent=67 // loop_body
                %v901 = vld [vmem:[%s899] sm:%s863]
                %902 = vst [vmem:[%s900] sm:%s863] %v901
                %s903 = sadd.s32 1, %s898
                %p904 = scmp.ge.s32.totalorder %s903, %s886
                %s905 = scalar_select %p904, 0, %s903
                %s906 = smul.u32 %s905, 8
                %s907 = smul.u32 %s905, 8
                %s908 = scalar_lea.vmem %s889, %s906 [#allocation4]
                %s909 = scalar_lea.vmem %s891, %s907
              $region80: #{tpu_custom_call.1} parent=67 // loop_footer
                %s895 = sadd.s32 %s893, 1
              $region81: #{tpu_custom_call.1} parent=67 // loop_footer_branch
                %892 = sbr.rel target = $region77
              $region82: #{tpu_custom_call.1} parent=67 // loop_exit
                _
            $region68: #{tpu_custom_call.1} parent=59 // pred_fallthru
              _
          $region60: #{tpu_custom_call.1} parent=55 // pred_fallthru
            _
          %960 = vnop
        $region56: #{tpu_custom_call.1} parent=47 // pred_fallthru
          _
      $region48: #{tpu_custom_call.1} parent=5 // pred_fallthru
        _
      %p961 = scmp.le.s32.totalorder 2, %s14
      // Predicated region
      $region105: #{tpu_custom_call.1} parent=5 // pred_check
        %p962 = pneg %p961
      $region106: #{tpu_custom_call.1} parent=5 // pred_check_branch
        %964 = sbr.rel (%p962) target = $region108
      $region107: #{tpu_custom_call.1} parent=5 // pred_region
        %s965 = ssub.s32 %s14, 2
        // Predicated region
        $region109: #{tpu_custom_call.1} parent=107 // pred_check
          %p966 = pneg %p195
        $region110: #{tpu_custom_call.1} parent=107 // pred_check_branch
          %968 = sbr.rel (%p966) target = $region112
        $region111: #{tpu_custom_call.1} parent=107 // pred_region
          %s969 = sand.u32 %s180, 1
          %s970 = sand.u32 %s180, 1
          %s971 = smul.addr %s970, 16
          %s972 = scalar_lea.vmem [#allocation4], %s971
        $region112: #{tpu_custom_call.1} parent=107 // pred_fallthru
          _
      $region108: #{tpu_custom_call.1} parent=5 // pred_fallthru
        _
    $region6: #{tpu_custom_call.1} parent=1 // loop_footer
      %s18 = sadd.s32 1, %s14
    $region7: #{tpu_custom_call.1} parent=1 // loop_footer_branch
      %13 = sbr.rel target = $region3
    $region8: #{tpu_custom_call.1} parent=1 // loop_exit
      _
    %973 = vsyncpa [#allocation3], 1
    %s974 = scalar_lea.sflag [#allocation3], 1
    %975 = vsyncpa %s974, 1

</llo_original>
